<compile_context>
chip_gen: v7x
topology: tpu7x:2x2x1
jax: 0.10.0
libtpu: 0.0.40
codegen_flags: <defaults>
</compile_context>

<pallas_src>
import jax
import jax.numpy as jnp
from jax.experimental import pallas as pl
from jax.experimental.pallas import tpu as pltpu


def _supports_bf16_eup():
    """bf16 VPU/EUP exists on v6e / v7x; v5e (and older) upcast -> keep f32."""
    try:
        kind = jax.devices()[0].device_kind.lower()
    except Exception:
        return False
    return ("v6" in kind) or ("v7" in kind)


def _make_kernel(bf16_energy, approx_recip):
    en_dtype = jnp.bfloat16 if bf16_energy else jnp.float32

    def kernel(elem_ref, comp_ref, wet_ref, wdt_ref, bias_ref, v_ref,
               ctx_ref, attn_ref):
        # elem_ref: (E, Denc, R) f32   comp_ref: (Ddec, R) f32
        # wet_ref:  (E, H, Denc)       wdt_ref:  (H, Ddec)   (mm dtype)
        # bias_ref: (H, 1) f32 (= be + bd)   v_ref: (H, 1) f32
        # ctx_ref:  (Denc, R)          attn_ref: (E, R)
        keys = elem_ref[...]                                   # (E, Denc, R)
        q = comp_ref[...]                                      # (Ddec, R)
        mm_dtype = wet_ref.dtype

        # Batched (per enc element) projection on the MXU, R on the lane axis.
        enc_proj = jax.lax.dot_general(
            wet_ref[...], keys.astype(mm_dtype),
            dimension_numbers=(((2,), (1,)), ((0,), (0,))),
            preferred_element_type=jnp.float32)                # (E, H, R)
        dec_proj = jnp.dot(wdt_ref[...], q.astype(mm_dtype),
                           preferred_element_type=jnp.float32)  # (H, R)
        dec_proj = dec_proj + bias_ref[...]                     # + (be + bd)

        z = enc_proj + dec_proj[None]                           # (E, H, R)
        # tanh dominates the EUP slot -> bf16 on bf16-EUP chips, f32 otherwise.
        energy = jnp.tanh(z.astype(en_dtype)).astype(jnp.float32)

        # Score: VPU multiply + per-slab sublane reduce over H (keepdims so the
        # softmax / context path stays lane-aligned with keys: no relayout).
        scores = jnp.sum(energy * v_ref[...], axis=1, keepdims=True)   # (E,1,R)

        # Softmax over enc_element_num (axis 0).
        m = jnp.max(scores, axis=0, keepdims=True)              # (1, 1, R)
        e = jnp.exp(scores - m)                                 # (E, 1, R)
        denom = jnp.sum(e, axis=0, keepdims=True)               # (1, 1, R)
        if approx_recip:
            attn = e * pl.reciprocal(denom, approx=True)        # EUP slot
        else:
            attn = e / denom

        # Context: lane-aligned broadcast multiply + reduce over E.
        context = jnp.sum(attn * keys, axis=0)                  # (Denc, R)

        ctx_ref[...] = context.astype(ctx_ref.dtype)            # lane-dense in R
        attn_ref[...] = attn[:, 0, :].astype(attn_ref.dtype)    # (E, R) lane-dense

    return kernel


def _choose_block_rows(M, E, Denc, Ddec, H, vmem_budget_bytes=12 << 20):
    """Pick rows-per-grid-step R (multiple of 128) from a VMEM budget."""
    # Conservative f32 per-row estimate: double-buffered I/O blocks plus ~3 live
    # (E, H, R)-sized intermediates (enc_proj / energy / score product).
    per_row = (2 * E * Denc * 4        # keys double buffer
               + 2 * Ddec * 4          # queries double buffer
               + 2 * (Denc + E) * 4    # context / attn output double buffers
               + 3 * E * H * 4)        # elementwise intermediates
    r = (vmem_budget_bytes // max(per_row, 1)) // 128 * 128
    r = int(max(128, min(r, 2048)))
    if M >= 256:
        # Keep grid >= 2 so both v7x TensorCores get work ("parallel" axis) and
        # the pipeline has more than one stage; costs nothing on v5e/v6e.
        r = min(r, max(128, (M // 2) // 128 * 128))
    # Never larger than the (128-padded) problem.
    r = min(r, max(128, -(-M // 128) * 128))
    return r


def homo_attention(elements_group, compare_group, params, *, block_rows=None,
                   use_bf16_matmul=True, bf16_energy=None, approx_recip=True):
    """elements_group: (E, B, N, Denc) f32; compare_group: (B, N, Ddec) f32."""
    E, B, N, Denc = elements_group.shape
    _, _, Ddec = compare_group.shape
    we, be, wd, bd, v = params
    H = we.shape[1]
    M = B * N

    if bf16_energy is None:
        bf16_energy = _supports_bf16_eup()
    mm_dtype = jnp.bfloat16 if use_bf16_matmul else jnp.float32

    # Transposed layout: big row axis M lands on lanes inside the kernel.
    elems_t = jnp.transpose(elements_group, (0, 3, 1, 2)).reshape(E, Denc, M)
    comps_t = compare_group.reshape(M, Ddec).T                   # (Ddec, M)

    # Weights: transposed, enc weight pre-broadcast over E for the batched dot.
    wet_b = jnp.broadcast_to(we.T[None], (E, H, Denc)).astype(mm_dtype)
    wdt = wd.T.astype(mm_dtype)                                  # (H, Ddec)
    bias = (be + bd).reshape(H, 1).astype(jnp.float32)
    v2 = v.reshape(H, 1).astype(jnp.float32)

    R = _choose_block_rows(M, E, Denc, Ddec, H) if block_rows is None else block_rows
    M_pad = -(-M // R) * R
    if M_pad != M:
        elems_t = jnp.pad(elems_t, ((0, 0), (0, 0), (0, M_pad - M)))
        comps_t = jnp.pad(comps_t, ((0, 0), (0, M_pad - M)))
    grid = (M_pad // R,)

    kernel = _make_kernel(bf16_energy, approx_recip)

    ctx_t, attn_em = pl.pallas_call(
        kernel,
        out_shape=(jax.ShapeDtypeStruct((Denc, M_pad), jnp.float32),
                   jax.ShapeDtypeStruct((E, M_pad), jnp.float32)),
        grid_spec=pltpu.PrefetchScalarGridSpec(
            num_scalar_prefetch=0,
            grid=grid,
            in_specs=[
                pl.BlockSpec((E, Denc, R), lambda i: (0, 0, i)),   # keys block
                pl.BlockSpec((Ddec, R), lambda i: (0, i)),         # queries block
                pl.BlockSpec((E, H, Denc), lambda i: (0, 0, 0)),   # We^T (bcast E)
                pl.BlockSpec((H, Ddec), lambda i: (0, 0)),         # Wd^T
                pl.BlockSpec((H, 1), lambda i: (0, 0)),            # be + bd
                pl.BlockSpec((H, 1), lambda i: (0, 0)),            # v
            ],
            out_specs=[
                pl.BlockSpec((Denc, R), lambda i: (0, i)),         # context (lane-dense)
                pl.BlockSpec((E, R), lambda i: (0, i)),            # attn (lane-dense)
            ],
        ),
        compiler_params=pltpu.CompilerParams(
            dimension_semantics=("parallel",),                     # megacore-shardable
            vmem_limit_bytes=32 * 1024 * 1024),
    )(elems_t, comps_t, wet_b, wdt, bias, v2)

    # Only the small output tensors are transposed in the wrapper.
    context_group = ctx_t[:, :M].T.reshape(B, N, Denc)
    attn_weight_group = jnp.transpose(attn_em[:, :M].reshape(E, B, N), (1, 2, 0))
    return context_group, attn_weight_group


def init_params(key, enc_vec_size, dec_vec_size, attn_hidden_size):
    # Deterministic synthetic init (equivalent to the Attention module's
    # enc-proj Linear, dec-proj Linear and score vector v).
    k1, k2, k3, k4, k5 = jax.random.split(key, 5)
    we = jax.random.normal(k1, (enc_vec_size, attn_hidden_size), jnp.float32) * 0.1
    be = jax.random.normal(k2, (attn_hidden_size,), jnp.float32) * 0.1
    wd = jax.random.normal(k3, (dec_vec_size, attn_hidden_size), jnp.float32) * 0.1
    bd = jax.random.normal(k4, (attn_hidden_size,), jnp.float32) * 0.1
    v = jax.random.normal(k5, (attn_hidden_size,), jnp.float32) * 0.1
    return we, be, wd, bd, v
    # TODO(synk): share_params=False variant (per-node weight sets) not wired;
    # it would index a leading node axis on each weight via the grid.


def _reference(elements_group, compare_group, params):
    we, be, wd, bd, v = params
    enc_proj = jnp.einsum('ebnd,dh->ebnh', elements_group, we) + be
    dec_proj = jnp.einsum('bnd,dh->bnh', compare_group, wd) + bd
    energy = jnp.tanh(enc_proj + dec_proj[None])
    scores = jnp.einsum('ebnh,h->ebn', energy, v)
    attn = jax.nn.softmax(scores, axis=0)                          # (E, B, N)
    context = jnp.einsum('ebn,ebnd->bnd', attn, elements_group)
    return context, jnp.transpose(attn, (1, 2, 0))


if __name__ == "__main__":
    enc_vec_size, dec_vec_size, attn_hidden_size = 16, 16, 32
    key = jax.random.PRNGKey(0)
    k_e, k_c, k_p = jax.random.split(key, 3)
    params = init_params(k_p, enc_vec_size, dec_vec_size, attn_hidden_size)

    # Small shape from the module spec (M = 8, padded to one 128-wide block).
    E, B, N = 8, 2, 4
    elements_group = jax.random.normal(k_e, (E, B, N, enc_vec_size), jnp.float32)
    compare_group = jax.random.normal(k_c, (B, N, dec_vec_size), jnp.float32)
    ctx_ref, attn_ref = _reference(elements_group, compare_group, params)

    # Exact path (f32 matmul / f32 tanh / exact reciprocal): tight tolerance.
    ctx_x, attn_x = homo_attention(elements_group, compare_group, params,
                                   use_bf16_matmul=False, bf16_energy=False,
                                   approx_recip=False)
    jax.block_until_ready((ctx_x, attn_x))
    assert ctx_x.shape == (B, N, enc_vec_size)
    assert attn_x.shape == (B, N, E)
    assert jnp.allclose(ctx_x, ctx_ref, atol=1e-4, rtol=1e-4)
    assert jnp.allclose(attn_x, attn_ref, atol=1e-4, rtol=1e-4)

    # Fast path (bf16 matmul, chip-gated bf16 tanh, approx reciprocal).
    ctx_f, attn_f = homo_attention(elements_group, compare_group, params)
    jax.block_until_ready((ctx_f, attn_f))
    assert jnp.allclose(ctx_f, ctx_ref, atol=1e-2, rtol=1e-2)
    assert jnp.allclose(attn_f, attn_ref, atol=1e-2, rtol=1e-2)

    # Larger case exercising multi-block grid (>=2 steps) plus row padding:
    # M = 3*50 = 150 -> R = 128, M_pad = 256, grid = (2,).
    E2, B2, N2 = 8, 3, 50
    k_e2, k_c2 = jax.random.split(jax.random.PRNGKey(1), 2)
    elements2 = jax.random.normal(k_e2, (E2, B2, N2, enc_vec_size), jnp.float32)
    compare2 = jax.random.normal(k_c2, (B2, N2, dec_vec_size), jnp.float32)
    ctx2, attn2 = homo_attention(elements2, compare2, params)
    jax.block_until_ready((ctx2, attn2))
    ctx2_ref, attn2_ref = _reference(elements2, compare2, params)
    assert jnp.allclose(ctx2, ctx2_ref, atol=1e-2, rtol=1e-2)
    assert jnp.allclose(attn2, attn2_ref, atol=1e-2, rtol=1e-2)

    print("KERNEL_OK")
</pallas_src>

<mosaic_0001>
module attributes {stable_mosaic.version = 11 : i64} {
  func.func @kernel(%arg0: i32, %arg1: memref<8x16x128xf32, #tpu.memory_space<vmem>>, %arg2: memref<16x128xf32, #tpu.memory_space<vmem>>, %arg3: memref<8x32x16xf32, #tpu.memory_space<vmem>>, %arg4: memref<32x16xf32, #tpu.memory_space<vmem>>, %arg5: memref<32x1xf32, #tpu.memory_space<vmem>>, %arg6: memref<32x1xf32, #tpu.memory_space<vmem>>, %arg7: memref<16x128xf32, #tpu.memory_space<vmem>>, %arg8: memref<8x128xf32, #tpu.memory_space<vmem>>) attributes {dimension_semantics = [#tpu.dimension_semantics<parallel>], iteration_bounds = array<i64: 1>, scalar_prefetch = 0 : i64, scratch_operands = 0 : i64, tpu.core_type = #tpu.core_type<tc>, window_params = [{transform_indices = @transform_0, window_bounds = array<i64: 8, 16, 128>}, {transform_indices = @transform_1, window_bounds = array<i64: 16, 128>}, {pipeline_mode = #tpu.pipeline_mode<synchronous>, transform_indices = @transform_2, window_bounds = array<i64: 8, 32, 16>}, {pipeline_mode = #tpu.pipeline_mode<synchronous>, transform_indices = @transform_3, window_bounds = array<i64: 32, 16>}, {pipeline_mode = #tpu.pipeline_mode<synchronous>, transform_indices = @transform_4, window_bounds = array<i64: 32, 1>}, {pipeline_mode = #tpu.pipeline_mode<synchronous>, transform_indices = @transform_5, window_bounds = array<i64: 32, 1>}, {transform_indices = @transform_6, window_bounds = array<i64: 16, 128>}, {transform_indices = @transform_7, window_bounds = array<i64: 8, 128>}]} {
    %c0 = arith.constant 0 : index
    %c0_0 = arith.constant 0 : index
    %c0_1 = arith.constant 0 : index
    %0 = vector.load %arg1[%c0, %c0_0, %c0_1] : memref<8x16x128xf32, #tpu.memory_space<vmem>>, vector<8x16x128xf32>
    %c0_2 = arith.constant 0 : index
    %c0_3 = arith.constant 0 : index
    %1 = vector.load %arg2[%c0_2, %c0_3] : memref<16x128xf32, #tpu.memory_space<vmem>>, vector<16x128xf32>
    %c0_4 = arith.constant 0 : index
    %c0_5 = arith.constant 0 : index
    %c0_6 = arith.constant 0 : index
    %2 = vector.load %arg3[%c0_4, %c0_5, %c0_6] : memref<8x32x16xf32, #tpu.memory_space<vmem>>, vector<8x32x16xf32>
    %cst = arith.constant dense<0.000000e+00> : vector<8x32x128xf32>
    %3 = tpu.matmul %2, %0, %cst {dimension_numbers = #tpu.dot_dimension_numbers<[2], [1], [1], [2], [0, 0, 0, 1, 1, 2], [0], [0]>} : vector<8x32x16xf32>, vector<8x16x128xf32>, vector<8x32x128xf32> -> vector<8x32x128xf32>
    %c0_7 = arith.constant 0 : index
    %c0_8 = arith.constant 0 : index
    %4 = vector.load %arg4[%c0_7, %c0_8] : memref<32x16xf32, #tpu.memory_space<vmem>>, vector<32x16xf32>
    %cst_9 = arith.constant dense<0.000000e+00> : vector<32x128xf32>
    %5 = tpu.matmul %4, %1, %cst_9 {dimension_numbers = #tpu.dot_dimension_numbers<[1], [0], [0], [1], [0, 0, 1, 1], [], []>} : vector<32x16xf32>, vector<16x128xf32>, vector<32x128xf32> -> vector<32x128xf32>
    %c0_10 = arith.constant 0 : index
    %c0_11 = arith.constant 0 : index
    %6 = vector.load %arg5[%c0_10, %c0_11] : memref<32x1xf32, #tpu.memory_space<vmem>>, vector<32x1xf32>
    %7 = vector.broadcast %6 : vector<32x1xf32> to vector<32x128xf32>
    %8 = arith.addf %5, %7 : vector<32x128xf32>
    %9 = vector.shape_cast %8 : vector<32x128xf32> to vector<1x32x128xf32>
    %10 = vector.broadcast %9 : vector<1x32x128xf32> to vector<8x32x128xf32>
    %11 = arith.addf %3, %10 : vector<8x32x128xf32>
    %12 = math.tanh %11 : vector<8x32x128xf32>
    %c0_12 = arith.constant 0 : index
    %c0_13 = arith.constant 0 : index
    %13 = vector.load %arg6[%c0_12, %c0_13] : memref<32x1xf32, #tpu.memory_space<vmem>>, vector<32x1xf32>
    %14 = vector.shape_cast %13 : vector<32x1xf32> to vector<1x32x1xf32>
    %15 = vector.broadcast %14 : vector<1x32x1xf32> to vector<8x32x128xf32>
    %16 = arith.mulf %12, %15 : vector<8x32x128xf32>
    %cst_14 = arith.constant dense<0.000000e+00> : vector<8x128xf32>
    %17 = vector.multi_reduction <add>, %16, %cst_14 [1] : vector<8x32x128xf32> to vector<8x128xf32>
    %18 = vector.shape_cast %17 : vector<8x128xf32> to vector<8x1x128xf32>
    %cst_15 = arith.constant dense<0xFF800000> : vector<1x128xf32>
    %19 = vector.multi_reduction <maximumf>, %18, %cst_15 [0] : vector<8x1x128xf32> to vector<1x128xf32>
    %20 = vector.shape_cast %19 : vector<1x128xf32> to vector<1x1x128xf32>
    %21 = vector.broadcast %20 : vector<1x1x128xf32> to vector<8x1x128xf32>
    %22 = arith.subf %18, %21 : vector<8x1x128xf32>
    %23 = math.exp %22 : vector<8x1x128xf32>
    %cst_16 = arith.constant dense<0.000000e+00> : vector<1x128xf32>
    %24 = vector.multi_reduction <add>, %23, %cst_16 [0] : vector<8x1x128xf32> to vector<1x128xf32>
    %25 = vector.shape_cast %24 : vector<1x128xf32> to vector<1x1x128xf32>
    %26 = vector.broadcast %25 : vector<1x1x128xf32> to vector<8x1x128xf32>
    %27 = arith.divf %23, %26 : vector<8x1x128xf32>
    %28 = vector.broadcast %27 : vector<8x1x128xf32> to vector<8x16x128xf32>
    %29 = arith.mulf %28, %0 : vector<8x16x128xf32>
    %cst_17 = arith.constant dense<0.000000e+00> : vector<16x128xf32>
    %30 = vector.multi_reduction <add>, %29, %cst_17 [0] : vector<8x16x128xf32> to vector<16x128xf32>
    %c0_18 = arith.constant 0 : index
    %c0_19 = arith.constant 0 : index
    %31 = vector.load %arg7[%c0_18, %c0_19] : memref<16x128xf32, #tpu.memory_space<vmem>>, vector<16x128xf32>
    tpu.vector_store %arg7[%c0_18, %c0_19], %30 {strides = array<i32>} : memref<16x128xf32, #tpu.memory_space<vmem>>, vector<16x128xf32>,
    %32 = vector.shape_cast %27 : vector<8x1x128xf32> to vector<8x128xf32>
    %c0_20 = arith.constant 0 : index
    %c0_21 = arith.constant 0 : index
    %33 = vector.load %arg8[%c0_20, %c0_21] : memref<8x128xf32, #tpu.memory_space<vmem>>, vector<8x128xf32>
    tpu.vector_store %arg8[%c0_20, %c0_21], %32 {strides = array<i32>} : memref<8x128xf32, #tpu.memory_space<vmem>>, vector<8x128xf32>,
    return
  }
  func.func @transform_0(%arg0: i32) -> (i32, i32, i32) {
    %c0_i32 = arith.constant 0 : i32
    %c0_i32_0 = arith.constant 0 : i32
    %c0_i32_1 = arith.constant 0 : i32
    return %c0_i32, %c0_i32_0, %arg0 : i32, i32, i32
  }
  func.func @transform_1(%arg0: i32) -> (i32, i32) {
    %c0_i32 = arith.constant 0 : i32
    %c0_i32_0 = arith.constant 0 : i32
    return %c0_i32, %arg0 : i32, i32
  }
  func.func @transform_2(%arg0: i32) -> (i32, i32, i32) {
    %c0_i32 = arith.constant 0 : i32
    %c0_i32_0 = arith.constant 0 : i32
    %c0_i32_1 = arith.constant 0 : i32
    %c0_i32_2 = arith.constant 0 : i32
    return %c0_i32, %c0_i32_0, %c0_i32_1 : i32, i32, i32
  }
  func.func @transform_3(%arg0: i32) -> (i32, i32) {
    %c0_i32 = arith.constant 0 : i32
    %c0_i32_0 = arith.constant 0 : i32
    %c0_i32_1 = arith.constant 0 : i32
    return %c0_i32, %c0_i32_0 : i32, i32
  }
  func.func @transform_4(%arg0: i32) -> (i32, i32) {
    %c0_i32 = arith.constant 0 : i32
    %c0_i32_0 = arith.constant 0 : i32
    %c0_i32_1 = arith.constant 0 : i32
    return %c0_i32, %c0_i32_0 : i32, i32
  }
  func.func @transform_5(%arg0: i32) -> (i32, i32) {
    %c0_i32 = arith.constant 0 : i32
    %c0_i32_0 = arith.constant 0 : i32
    %c0_i32_1 = arith.constant 0 : i32
    return %c0_i32, %c0_i32_0 : i32, i32
  }
  func.func @transform_6(%arg0: i32) -> (i32, i32) {
    %c0_i32 = arith.constant 0 : i32
    %c0_i32_0 = arith.constant 0 : i32
    return %c0_i32, %arg0 : i32, i32
  }
  func.func @transform_7(%arg0: i32) -> (i32, i32) {
    %c0_i32 = arith.constant 0 : i32
    %c0_i32_0 = arith.constant 0 : i32
    return %c0_i32, %arg0 : i32, i32
  }
}

</mosaic_0001>

<llo_original>
// kernel: tpu_custom_call.1
$region0: #{tpu_custom_call.1}
  #allocation0 [shape = 'u32[]', space=smem, size = 0x4, offset = 0x4, fixed_abs, tag = 'smem constant byte address 0x4 - core index']
  #allocation1 [shape = 'u32[144,128]{1,0:T(1,128)}', space=vmem, size = 0x12000, scoped, tag = 'internal scratch']
  %s0 = inlined_call_operand.vmem [shape: f32[8,16,128], index: 0, kind: input, shape index: {}]
  %s1 = inlined_call_operand.vmem [shape: f32[16,128], index: 1, kind: input, shape index: {}]
  %s2 = inlined_call_operand.vmem [shape: f32[8,32,16], index: 2, kind: input, shape index: {}]
  %s3 = inlined_call_operand.vmem [shape: f32[32,16], index: 3, kind: input, shape index: {}]
  %s4 = inlined_call_operand.vmem [shape: f32[32,1], index: 4, kind: input, shape index: {}]
  %s5 = inlined_call_operand.vmem [shape: f32[32,1], index: 5, kind: input, shape index: {}]
  %s6 = inlined_call_operand.hbm [shape: f32[16,128], index: 6, kind: output, shape index: {0}]
  %s7 = inlined_call_operand.hbm [shape: f32[8,128], index: 7, kind: output, shape index: {1}]
  %8 = xla_tuple %s6, %s7
  %s9 = sld [smem:[#allocation0]]
  $region42: #{tpu_custom_call.1} parent=0
    _
  %s11 = ssub.s32 1, %s9
  %s12 = scalar_select 0, %s11, %s9
  $region1: #{tpu_custom_call.1} parent=0
    #allocation2 [shape = 'u8[8192]{0}', space=vmem, size = 0x2000, scoped, tag = 'output window, operand 0, single buffered']
    #allocation3 [shape = 's32[1]{0}', space=sflag, size = 0x4, scoped, tag = 'scoped memory for tpu_custom_call.1']
    #allocation4 [shape = 'u8[4096]{0}', space=vmem, size = 0x1000, scoped, tag = 'output window, operand 1, single buffered']
    #allocation5 [shape = 's32[1]{0}', space=sflag, size = 0x4, scoped, tag = 'scoped memory for tpu_custom_call.1']
    %13 = vsyncpa [#allocation3], 0
    %14 = vsyncpa [#allocation5], 0
    // Predicated region
    $region2: #{tpu_custom_call.1} parent=1 // pred_check
      _
    $region3: #{tpu_custom_call.1} parent=1 // pred_check_branch
      %16 = sbr.rel (0) target = $region5
    $region4: #{tpu_custom_call.1} parent=1 // pred_region
      _
    $region5: #{tpu_custom_call.1} parent=1 // pred_fallthru
      _
    // Predicated region
    $region6: #{tpu_custom_call.1} parent=1 // pred_check
      _
    $region7: #{tpu_custom_call.1} parent=1 // pred_check_branch
      %18 = sbr.rel (0) target = $region9
    $region8: #{tpu_custom_call.1} parent=1 // pred_region
      _
    $region9: #{tpu_custom_call.1} parent=1 // pred_fallthru
      _
    // Predicated region
    $region10: #{tpu_custom_call.1} parent=1 // pred_check
      _
    $region11: #{tpu_custom_call.1} parent=1 // pred_check_branch
      %20 = sbr.rel (0) target = $region13
    $region12: #{tpu_custom_call.1} parent=1 // pred_region
      _
    $region13: #{tpu_custom_call.1} parent=1 // pred_fallthru
      _
    // Predicated region
    $region14: #{tpu_custom_call.1} parent=1 // pred_check
      _
    $region15: #{tpu_custom_call.1} parent=1 // pred_check_branch
      %22 = sbr.rel (0) target = $region17
    $region16: #{tpu_custom_call.1} parent=1 // pred_region
      _
    $region17: #{tpu_custom_call.1} parent=1 // pred_fallthru
      _
    // Predicated region
    $region18: #{tpu_custom_call.1} parent=1 // pred_check
      _
    $region19: #{tpu_custom_call.1} parent=1 // pred_check_branch
      %24 = sbr.rel (0) target = $region21
    $region20: #{tpu_custom_call.1} parent=1 // pred_region
      _
    $region21: #{tpu_custom_call.1} parent=1 // pred_fallthru
      _
    // Predicated region
    $region22: #{tpu_custom_call.1} parent=1 // pred_check
      _
    $region23: #{tpu_custom_call.1} parent=1 // pred_check_branch
      %26 = sbr.rel (0) target = $region25
    $region24: #{tpu_custom_call.1} parent=1 // pred_region
      _
    $region25: #{tpu_custom_call.1} parent=1 // pred_fallthru
      _
    %v27 = vld [vmem:[%s0] sm:$0xff]
    %v28 = vld [vmem:[%s0 + $0x8] sm:$0xff]
    %v29 = vld [vmem:[%s0 + $0x10] sm:$0xff]
    %v30 = vld [vmem:[%s0 + $0x18] sm:$0xff]
    %v31 = vld [vmem:[%s0 + $0x20] sm:$0xff]
    %v32 = vld [vmem:[%s0 + $0x28] sm:$0xff]
    %v33 = vld [vmem:[%s0 + $0x30] sm:$0xff]
    %v34 = vld [vmem:[%s0 + $0x38] sm:$0xff]
    %v35 = vld [vmem:[%s0 + $0x40] sm:$0xff]
    %v36 = vld [vmem:[%s0 + $0x48] sm:$0xff]
    %v37 = vld [vmem:[%s0 + $0x50] sm:$0xff]
    %v38 = vld [vmem:[%s0 + $0x58] sm:$0xff]
    %v39 = vld [vmem:[%s0 + $0x60] sm:$0xff]
    %v40 = vld [vmem:[%s0 + $0x68] sm:$0xff]
    %v41 = vld [vmem:[%s0 + $0x70] sm:$0xff]
    %v42 = vld [vmem:[%s0 + $0x78] sm:$0xff]
    %v43 = vld [vmem:[%s1] sm:$0xff]
    %v44 = vld [vmem:[%s1 + $0x8] sm:$0xff]
    %v45 = vld [vmem:[%s2] sm:$0xff]
    %v46 = vld [vmem:[%s2 + $0x8] sm:$0xff]
    %v47 = vld [vmem:[%s2 + $0x10] sm:$0xff]
    %v48 = vld [vmem:[%s2 + $0x18] sm:$0xff]
    %v49 = vld [vmem:[%s2 + $0x20] sm:$0xff]
    %v50 = vld [vmem:[%s2 + $0x28] sm:$0xff]
    %v51 = vld [vmem:[%s2 + $0x30] sm:$0xff]
    %v52 = vld [vmem:[%s2 + $0x38] sm:$0xff]
    %v53 = vld [vmem:[%s2 + $0x40] sm:$0xff]
    %v54 = vld [vmem:[%s2 + $0x48] sm:$0xff]
    %v55 = vld [vmem:[%s2 + $0x50] sm:$0xff]
    %v56 = vld [vmem:[%s2 + $0x58] sm:$0xff]
    %v57 = vld [vmem:[%s2 + $0x60] sm:$0xff]
    %v58 = vld [vmem:[%s2 + $0x68] sm:$0xff]
    %v59 = vld [vmem:[%s2 + $0x70] sm:$0xff]
    %v60 = vld [vmem:[%s2 + $0x78] sm:$0xff]
    %v61 = vld [vmem:[%s2 + $0x80] sm:$0xff]
    %v62 = vld [vmem:[%s2 + $0x88] sm:$0xff]
    %v63 = vld [vmem:[%s2 + $0x90] sm:$0xff]
    %v64 = vld [vmem:[%s2 + $0x98] sm:$0xff]
    %v65 = vld [vmem:[%s2 + $0xa0] sm:$0xff]
    %v66 = vld [vmem:[%s2 + $0xa8] sm:$0xff]
    %v67 = vld [vmem:[%s2 + $0xb0] sm:$0xff]
    %v68 = vld [vmem:[%s2 + $0xb8] sm:$0xff]
    %v69 = vld [vmem:[%s2 + $0xc0] sm:$0xff]
    %v70 = vld [vmem:[%s2 + $0xc8] sm:$0xff]
    %v71 = vld [vmem:[%s2 + $0xd0] sm:$0xff]
    %v72 = vld [vmem:[%s2 + $0xd8] sm:$0xff]
    %v73 = vld [vmem:[%s2 + $0xe0] sm:$0xff]
    %v74 = vld [vmem:[%s2 + $0xe8] sm:$0xff]
    %v75 = vld [vmem:[%s2 + $0xf0] sm:$0xff]
    %v76 = vld [vmem:[%s2 + $0xf8] sm:$0xff]
    %v77 = vld [vmem:[%s3] sm:$0xff]
    %v78 = vld [vmem:[%s3 + $0x8] sm:$0xff]
    %v79 = vld [vmem:[%s3 + $0x10] sm:$0xff]
    %v80 = vld [vmem:[%s3 + $0x18] sm:$0xff]
    %v81 = vld [vmem:[%s4] sm:$0xff]
    %v82 = vld [vmem:[%s4 + $0x8] sm:$0xff]
    %v83 = vld [vmem:[%s4 + $0x10] sm:$0xff]
    %v84 = vld [vmem:[%s4 + $0x18] sm:$0xff]
    %86 = vset.pattern.permute.xlu0 0
    %87 = vperm.xlu0 %86, %v81
    %v88 = vpop.permute.xlu0 %87
    %91 = vset.pattern.permute.xlu0 0
    %92 = vperm.xlu0 %91, %v82
    %v93 = vpop.permute.xlu0 %92
    %96 = vset.pattern.permute.xlu0 0
    %97 = vperm.xlu0 %96, %v83
    %v98 = vpop.permute.xlu0 %97
    %101 = vset.pattern.permute.xlu0 0
    %102 = vperm.xlu0 %101, %v84
    %v103 = vpop.permute.xlu0 %102
    %vm105 = vcmask 130048
    %v107 = vsel %vm105, %v77, 0
    %v110 = vsel %vm105, %v78, 0
    %v113 = vsel %vm105, %v79, 0
    %v116 = vsel %vm105, %v80, 0
    %118 = vmatprep.subr.mxu0 0.0
    %119 = vmatpush1.msra.mxu0 %v43
    %120 = vmatprep.subr.mxu0 0.0
    %121 = vmatpush1.msra.mxu0 %v44
    %122 = vmatprep.subr.mxu0 0.0
    %123 = vmatpush1.msra.mxu0 0.0
    %124 = vmatprep.subr.mxu0 0.0
    %125 = vmatpush1.msra.mxu0 0.0
    %126 = vmatprep.subr.mxu0 0.0
    %127 = vmatpush1.msra.mxu0 0.0
    %128 = vmatprep.subr.mxu0 0.0
    %129 = vmatpush1.msra.mxu0 0.0
    %130 = vmatprep.subr.mxu0 0.0
    %131 = vmatpush1.msra.mxu0 0.0
    %132 = vmatprep.subr.mxu0 0.0
    %133 = vmatpush1.msra.mxu0 0.0
    %134 = vmatprep.subr.mxu0 0.0
    %135 = vmatpush1.msra.mxu0 0.0
    %136 = vmatprep.subr.mxu0 0.0
    %137 = vmatpush1.msra.mxu0 0.0
    %138 = vmatprep.subr.mxu0 0.0
    %139 = vmatpush1.msra.mxu0 0.0
    %140 = vmatprep.subr.mxu0 0.0
    %141 = vmatpush1.msra.mxu0 0.0
    %142 = vmatprep.subr.mxu0 0.0
    %143 = vmatpush1.msra.mxu0 0.0
    %144 = vmatprep.subr.mxu0 0.0
    %145 = vmatpush1.msra.mxu0 0.0
    %146 = vmatprep.subr.mxu0 0.0
    %147 = vmatpush1.msra.mxu0 0.0
    %148 = vmatprep.subr.mxu0 0.0
    %149 = vmatpush1.msra.mxu0 0.0
    %150 = vmatprep.subr.mxu0 0.0
    %151 = vmatpush1.msra.mxu0 0.0
    %152 = vmatprep.subr.mxu0 0.0
    %153 = vmatpush1.msra.mxu0 0.0
    %154 = vmatprep.subr.mxu0 0.0
    %155 = vmatpush1.msra.mxu0 0.0
    %156 = vmatprep.subr.mxu0 0.0
    %157 = vmatpush1.msra.mxu0 0.0
    %158 = vmatprep.subr.mxu0 0.0
    %159 = vmatpush1.msra.mxu0 0.0
    %160 = vmatprep.subr.mxu0 0.0
    %161 = vmatpush1.msra.mxu0 0.0
    %162 = vmatprep.subr.mxu0 0.0
    %163 = vmatpush1.msra.mxu0 0.0
    %164 = vmatprep.subr.mxu0 0.0
    %165 = vmatpush1.msra.mxu0 0.0
    %166 = vmatprep.subr.mxu0 0.0
    %167 = vmatpush1.msra.mxu0 0.0
    %168 = vmatprep.subr.mxu0 0.0
    %169 = vmatpush1.msra.mxu0 0.0
    %170 = vmatprep.subr.mxu0 0.0
    %171 = vmatpush1.msra.mxu0 0.0
    %172 = vmatprep.subr.mxu0 0.0
    %173 = vmatpush1.msra.mxu0 0.0
    %174 = vmatprep.subr.mxu0 0.0
    %175 = vmatpush1.msra.mxu0 0.0
    %176 = vmatprep.subr.mxu0 0.0
    %177 = vmatpush1.msra.mxu0 0.0
    %178 = vmatprep.subr.mxu0 0.0
    %179 = vmatpush1.msra.mxu0 0.0
    %180 = vmatprep.subr.mxu0 0.0
    %181 = vmatpush1.msra.mxu0 0.0
    %182 = vmatprep.mubr.f32.mxu0 0.0
    %183 = vmatmul.mubr.f32.gmra.mrb[0].mxu0 %v107
    %v184 = vpop.f32.mrb[0].mxu0
    %v185 = vadd.f32 %v88, %v184
    %v186 = vpop.f32.mrb[0].mxu0
    %187 = vmatprep.mubr.f32.mxu0 0.0
    %188 = vmatmul.mubr.f32.gmra.mrb[0].mxu0 %v110
    %v189 = vpop.f32.mrb[0].mxu0
    %v190 = vadd.f32 %v93, %v189
    %v191 = vpop.f32.mrb[0].mxu0
    %192 = vmatprep.mubr.f32.mxu0 0.0
    %193 = vmatmul.mubr.f32.gmra.mrb[0].mxu0 %v113
    %v194 = vpop.f32.mrb[0].mxu0
    %v195 = vadd.f32 %v98, %v194
    %v196 = vpop.f32.mrb[0].mxu0
    %197 = vmatprep.mubr.f32.mxu0 0.0
    %198 = vmatmul.mubr.f32.gmra.mrb[0].mxu0 %v116
    %v199 = vpop.f32.mrb[0].mxu0
    %v200 = vadd.f32 %v103, %v199
    %v201 = vpop.f32.mrb[0].mxu0
    %202 = vdwg.mxu0
    %v204 = vsel %vm105, %v45, 0
    %v207 = vsel %vm105, %v46, 0
    %v210 = vsel %vm105, %v47, 0
    %v213 = vsel %vm105, %v48, 0
    %215 = vmatprep.subr.mxu0 0.0
    %216 = vmatpush1.msra.mxu0 %v27
    %217 = vmatprep.subr.mxu0 0.0
    %218 = vmatpush1.msra.mxu0 %v28
    %219 = vmatprep.subr.mxu0 0.0
    %220 = vmatpush1.msra.mxu0 0.0
    %221 = vmatprep.subr.mxu0 0.0
    %222 = vmatpush1.msra.mxu0 0.0
    %223 = vmatprep.subr.mxu0 0.0
    %224 = vmatpush1.msra.mxu0 0.0
    %225 = vmatprep.subr.mxu0 0.0
    %226 = vmatpush1.msra.mxu0 0.0
    %227 = vmatprep.subr.mxu0 0.0
    %228 = vmatpush1.msra.mxu0 0.0
    %229 = vmatprep.subr.mxu0 0.0
    %230 = vmatpush1.msra.mxu0 0.0
    %231 = vmatprep.subr.mxu0 0.0
    %232 = vmatpush1.msra.mxu0 0.0
    %233 = vmatprep.subr.mxu0 0.0
    %234 = vmatpush1.msra.mxu0 0.0
    %235 = vmatprep.subr.mxu0 0.0
    %236 = vmatpush1.msra.mxu0 0.0
    %237 = vmatprep.subr.mxu0 0.0
    %238 = vmatpush1.msra.mxu0 0.0
    %239 = vmatprep.subr.mxu0 0.0
    %240 = vmatpush1.msra.mxu0 0.0
    %241 = vmatprep.subr.mxu0 0.0
    %242 = vmatpush1.msra.mxu0 0.0
    %243 = vmatprep.subr.mxu0 0.0
    %244 = vmatpush1.msra.mxu0 0.0
    %245 = vmatprep.subr.mxu0 0.0
    %246 = vmatpush1.msra.mxu0 0.0
    %247 = vmatprep.subr.mxu0 0.0
    %248 = vmatpush1.msra.mxu0 0.0
    %249 = vmatprep.subr.mxu0 0.0
    %250 = vmatpush1.msra.mxu0 0.0
    %251 = vmatprep.subr.mxu0 0.0
    %252 = vmatpush1.msra.mxu0 0.0
    %253 = vmatprep.subr.mxu0 0.0
    %254 = vmatpush1.msra.mxu0 0.0
    %255 = vmatprep.subr.mxu0 0.0
    %256 = vmatpush1.msra.mxu0 0.0
    %257 = vmatprep.subr.mxu0 0.0
    %258 = vmatpush1.msra.mxu0 0.0
    %259 = vmatprep.subr.mxu0 0.0
    %260 = vmatpush1.msra.mxu0 0.0
    %261 = vmatprep.subr.mxu0 0.0
    %262 = vmatpush1.msra.mxu0 0.0
    %263 = vmatprep.subr.mxu0 0.0
    %264 = vmatpush1.msra.mxu0 0.0
    %265 = vmatprep.subr.mxu0 0.0
    %266 = vmatpush1.msra.mxu0 0.0
    %267 = vmatprep.subr.mxu0 0.0
    %268 = vmatpush1.msra.mxu0 0.0
    %269 = vmatprep.subr.mxu0 0.0
    %270 = vmatpush1.msra.mxu0 0.0
    %271 = vmatprep.subr.mxu0 0.0
    %272 = vmatpush1.msra.mxu0 0.0
    %273 = vmatprep.subr.mxu0 0.0
    %274 = vmatpush1.msra.mxu0 0.0
    %275 = vmatprep.subr.mxu0 0.0
    %276 = vmatpush1.msra.mxu0 0.0
    %277 = vmatprep.subr.mxu0 0.0
    %278 = vmatpush1.msra.mxu0 0.0
    %279 = vmatprep.mubr.f32.mxu0 0.0
    %280 = vmatmul.mubr.f32.gmra.mrb[0].mxu0 %v204
    %v281 = vpop.f32.mrb[0].mxu0
    %v282 = vadd.f32 %v185, %v281
    %v283 = vpop.f32.mrb[0].mxu0
    %284 = vmatprep.mubr.f32.mxu0 0.0
    %285 = vmatmul.mubr.f32.gmra.mrb[0].mxu0 %v207
    %v286 = vpop.f32.mrb[0].mxu0
    %v287 = vadd.f32 %v190, %v286
    %v288 = vpop.f32.mrb[0].mxu0
    %289 = vmatprep.mubr.f32.mxu0 0.0
    %290 = vmatmul.mubr.f32.gmra.mrb[0].mxu0 %v210
    %v291 = vpop.f32.mrb[0].mxu0
    %v292 = vadd.f32 %v195, %v291
    %v293 = vpop.f32.mrb[0].mxu0
    %294 = vmatprep.mubr.f32.mxu0 0.0
    %295 = vmatmul.mubr.f32.gmra.mrb[0].mxu0 %v213
    %v296 = vpop.f32.mrb[0].mxu0
    %v297 = vadd.f32 %v200, %v296
    %v298 = vpop.f32.mrb[0].mxu0
    %299 = vdwg.mxu0
    %v301 = vsel %vm105, %v49, 0
    %v304 = vsel %vm105, %v50, 0
    %v307 = vsel %vm105, %v51, 0
    %v310 = vsel %vm105, %v52, 0
    %312 = vmatprep.subr.mxu0 0.0
    %313 = vmatpush1.msra.mxu0 %v29
    %314 = vmatprep.subr.mxu0 0.0
    %315 = vmatpush1.msra.mxu0 %v30
    %316 = vmatprep.subr.mxu0 0.0
    %317 = vmatpush1.msra.mxu0 0.0
    %318 = vmatprep.subr.mxu0 0.0
    %319 = vmatpush1.msra.mxu0 0.0
    %320 = vmatprep.subr.mxu0 0.0
    %321 = vmatpush1.msra.mxu0 0.0
    %322 = vmatprep.subr.mxu0 0.0
    %323 = vmatpush1.msra.mxu0 0.0
    %324 = vmatprep.subr.mxu0 0.0
    %325 = vmatpush1.msra.mxu0 0.0
    %326 = vmatprep.subr.mxu0 0.0
    %327 = vmatpush1.msra.mxu0 0.0
    %328 = vmatprep.subr.mxu0 0.0
    %329 = vmatpush1.msra.mxu0 0.0
    %330 = vmatprep.subr.mxu0 0.0
    %331 = vmatpush1.msra.mxu0 0.0
    %332 = vmatprep.subr.mxu0 0.0
    %333 = vmatpush1.msra.mxu0 0.0
    %334 = vmatprep.subr.mxu0 0.0
    %335 = vmatpush1.msra.mxu0 0.0
    %336 = vmatprep.subr.mxu0 0.0
    %337 = vmatpush1.msra.mxu0 0.0
    %338 = vmatprep.subr.mxu0 0.0
    %339 = vmatpush1.msra.mxu0 0.0
    %340 = vmatprep.subr.mxu0 0.0
    %341 = vmatpush1.msra.mxu0 0.0
    %342 = vmatprep.subr.mxu0 0.0
    %343 = vmatpush1.msra.mxu0 0.0
    %344 = vmatprep.subr.mxu0 0.0
    %345 = vmatpush1.msra.mxu0 0.0
    %346 = vmatprep.subr.mxu0 0.0
    %347 = vmatpush1.msra.mxu0 0.0
    %348 = vmatprep.subr.mxu0 0.0
    %349 = vmatpush1.msra.mxu0 0.0
    %350 = vmatprep.subr.mxu0 0.0
    %351 = vmatpush1.msra.mxu0 0.0
    %352 = vmatprep.subr.mxu0 0.0
    %353 = vmatpush1.msra.mxu0 0.0
    %354 = vmatprep.subr.mxu0 0.0
    %355 = vmatpush1.msra.mxu0 0.0
    %356 = vmatprep.subr.mxu0 0.0
    %357 = vmatpush1.msra.mxu0 0.0
    %358 = vmatprep.subr.mxu0 0.0
    %359 = vmatpush1.msra.mxu0 0.0
    %360 = vmatprep.subr.mxu0 0.0
    %361 = vmatpush1.msra.mxu0 0.0
    %362 = vmatprep.subr.mxu0 0.0
    %363 = vmatpush1.msra.mxu0 0.0
    %364 = vmatprep.subr.mxu0 0.0
    %365 = vmatpush1.msra.mxu0 0.0
    %366 = vmatprep.subr.mxu0 0.0
    %367 = vmatpush1.msra.mxu0 0.0
    %368 = vmatprep.subr.mxu0 0.0
    %369 = vmatpush1.msra.mxu0 0.0
    %370 = vmatprep.subr.mxu0 0.0
    %371 = vmatpush1.msra.mxu0 0.0
    %372 = vmatprep.subr.mxu0 0.0
    %373 = vmatpush1.msra.mxu0 0.0
    %374 = vmatprep.subr.mxu0 0.0
    %375 = vmatpush1.msra.mxu0 0.0
    %376 = vmatprep.mubr.f32.mxu0 0.0
    %377 = vmatmul.mubr.f32.gmra.mrb[0].mxu0 %v301
    %v378 = vpop.f32.mrb[0].mxu0
    %v379 = vadd.f32 %v185, %v378
    %v380 = vpop.f32.mrb[0].mxu0
    %381 = vmatprep.mubr.f32.mxu0 0.0
    %382 = vmatmul.mubr.f32.gmra.mrb[0].mxu0 %v304
    %v383 = vpop.f32.mrb[0].mxu0
    %v384 = vadd.f32 %v190, %v383
    %v385 = vpop.f32.mrb[0].mxu0
    %386 = vmatprep.mubr.f32.mxu0 0.0
    %387 = vmatmul.mubr.f32.gmra.mrb[0].mxu0 %v307
    %v388 = vpop.f32.mrb[0].mxu0
    %v389 = vadd.f32 %v195, %v388
    %v390 = vpop.f32.mrb[0].mxu0
    %391 = vmatprep.mubr.f32.mxu0 0.0
    %392 = vmatmul.mubr.f32.gmra.mrb[0].mxu0 %v310
    %v393 = vpop.f32.mrb[0].mxu0
    %v394 = vadd.f32 %v200, %v393
    %v395 = vpop.f32.mrb[0].mxu0
    %396 = vdwg.mxu0
    %v398 = vsel %vm105, %v53, 0
    %v401 = vsel %vm105, %v54, 0
    %v404 = vsel %vm105, %v55, 0
    %v407 = vsel %vm105, %v56, 0
    %409 = vmatprep.subr.mxu0 0.0
    %410 = vmatpush1.msra.mxu0 %v31
    %411 = vmatprep.subr.mxu0 0.0
    %412 = vmatpush1.msra.mxu0 %v32
    %413 = vmatprep.subr.mxu0 0.0
    %414 = vmatpush1.msra.mxu0 0.0
    %415 = vmatprep.subr.mxu0 0.0
    %416 = vmatpush1.msra.mxu0 0.0
    %417 = vmatprep.subr.mxu0 0.0
    %418 = vmatpush1.msra.mxu0 0.0
    %419 = vmatprep.subr.mxu0 0.0
    %420 = vmatpush1.msra.mxu0 0.0
    %421 = vmatprep.subr.mxu0 0.0
    %422 = vmatpush1.msra.mxu0 0.0
    %423 = vmatprep.subr.mxu0 0.0
    %424 = vmatpush1.msra.mxu0 0.0
    %425 = vmatprep.subr.mxu0 0.0
    %426 = vmatpush1.msra.mxu0 0.0
    %427 = vmatprep.subr.mxu0 0.0
    %428 = vmatpush1.msra.mxu0 0.0
    %429 = vmatprep.subr.mxu0 0.0
    %430 = vmatpush1.msra.mxu0 0.0
    %431 = vmatprep.subr.mxu0 0.0
    %432 = vmatpush1.msra.mxu0 0.0
    %433 = vmatprep.subr.mxu0 0.0
    %434 = vmatpush1.msra.mxu0 0.0
    %435 = vmatprep.subr.mxu0 0.0
    %436 = vmatpush1.msra.mxu0 0.0
    %437 = vmatprep.subr.mxu0 0.0
    %438 = vmatpush1.msra.mxu0 0.0
    %439 = vmatprep.subr.mxu0 0.0
    %440 = vmatpush1.msra.mxu0 0.0
    %441 = vmatprep.subr.mxu0 0.0
    %442 = vmatpush1.msra.mxu0 0.0
    %443 = vmatprep.subr.mxu0 0.0
    %444 = vmatpush1.msra.mxu0 0.0
    %445 = vmatprep.subr.mxu0 0.0
    %446 = vmatpush1.msra.mxu0 0.0
    %447 = vmatprep.subr.mxu0 0.0
    %448 = vmatpush1.msra.mxu0 0.0
    %449 = vmatprep.subr.mxu0 0.0
    %450 = vmatpush1.msra.mxu0 0.0
    %451 = vmatprep.subr.mxu0 0.0
    %452 = vmatpush1.msra.mxu0 0.0
    %453 = vmatprep.subr.mxu0 0.0
    %454 = vmatpush1.msra.mxu0 0.0
    %455 = vmatprep.subr.mxu0 0.0
    %456 = vmatpush1.msra.mxu0 0.0
    %457 = vmatprep.subr.mxu0 0.0
    %458 = vmatpush1.msra.mxu0 0.0
    %459 = vmatprep.subr.mxu0 0.0
    %460 = vmatpush1.msra.mxu0 0.0
    %461 = vmatprep.subr.mxu0 0.0
    %462 = vmatpush1.msra.mxu0 0.0
    %463 = vmatprep.subr.mxu0 0.0
    %464 = vmatpush1.msra.mxu0 0.0
    %465 = vmatprep.subr.mxu0 0.0
    %466 = vmatpush1.msra.mxu0 0.0
    %467 = vmatprep.subr.mxu0 0.0
    %468 = vmatpush1.msra.mxu0 0.0
    %469 = vmatprep.subr.mxu0 0.0
    %470 = vmatpush1.msra.mxu0 0.0
    %471 = vmatprep.subr.mxu0 0.0
    %472 = vmatpush1.msra.mxu0 0.0
    %473 = vmatprep.mubr.f32.mxu0 0.0
    %474 = vmatmul.mubr.f32.gmra.mrb[0].mxu0 %v398
    %v475 = vpop.f32.mrb[0].mxu0
    %v476 = vadd.f32 %v185, %v475
    %v477 = vpop.f32.mrb[0].mxu0
    %478 = vmatprep.mubr.f32.mxu0 0.0
    %479 = vmatmul.mubr.f32.gmra.mrb[0].mxu0 %v401
    %v480 = vpop.f32.mrb[0].mxu0
    %v481 = vadd.f32 %v190, %v480
    %v482 = vpop.f32.mrb[0].mxu0
    %483 = vmatprep.mubr.f32.mxu0 0.0
    %484 = vmatmul.mubr.f32.gmra.mrb[0].mxu0 %v404
    %v485 = vpop.f32.mrb[0].mxu0
    %v486 = vadd.f32 %v195, %v485
    %v487 = vpop.f32.mrb[0].mxu0
    %488 = vmatprep.mubr.f32.mxu0 0.0
    %489 = vmatmul.mubr.f32.gmra.mrb[0].mxu0 %v407
    %v490 = vpop.f32.mrb[0].mxu0
    %v491 = vadd.f32 %v200, %v490
    %v492 = vpop.f32.mrb[0].mxu0
    %493 = vdwg.mxu0
    %v495 = vsel %vm105, %v57, 0
    %v498 = vsel %vm105, %v58, 0
    %v501 = vsel %vm105, %v59, 0
    %v504 = vsel %vm105, %v60, 0
    %506 = vmatprep.subr.mxu0 0.0
    %507 = vmatpush1.msra.mxu0 %v33
    %508 = vmatprep.subr.mxu0 0.0
    %509 = vmatpush1.msra.mxu0 %v34
    %510 = vmatprep.subr.mxu0 0.0
    %511 = vmatpush1.msra.mxu0 0.0
    %512 = vmatprep.subr.mxu0 0.0
    %513 = vmatpush1.msra.mxu0 0.0
    %514 = vmatprep.subr.mxu0 0.0
    %515 = vmatpush1.msra.mxu0 0.0
    %516 = vmatprep.subr.mxu0 0.0
    %517 = vmatpush1.msra.mxu0 0.0
    %518 = vmatprep.subr.mxu0 0.0
    %519 = vmatpush1.msra.mxu0 0.0
    %520 = vmatprep.subr.mxu0 0.0
    %521 = vmatpush1.msra.mxu0 0.0
    %522 = vmatprep.subr.mxu0 0.0
    %523 = vmatpush1.msra.mxu0 0.0
    %524 = vmatprep.subr.mxu0 0.0
    %525 = vmatpush1.msra.mxu0 0.0
    %526 = vmatprep.subr.mxu0 0.0
    %527 = vmatpush1.msra.mxu0 0.0
    %528 = vmatprep.subr.mxu0 0.0
    %529 = vmatpush1.msra.mxu0 0.0
    %530 = vmatprep.subr.mxu0 0.0
    %531 = vmatpush1.msra.mxu0 0.0
    %532 = vmatprep.subr.mxu0 0.0
    %533 = vmatpush1.msra.mxu0 0.0
    %534 = vmatprep.subr.mxu0 0.0
    %535 = vmatpush1.msra.mxu0 0.0
    %536 = vmatprep.subr.mxu0 0.0
    %537 = vmatpush1.msra.mxu0 0.0
    %538 = vmatprep.subr.mxu0 0.0
    %539 = vmatpush1.msra.mxu0 0.0
    %540 = vmatprep.subr.mxu0 0.0
    %541 = vmatpush1.msra.mxu0 0.0
    %542 = vmatprep.subr.mxu0 0.0
    %543 = vmatpush1.msra.mxu0 0.0
    %544 = vmatprep.subr.mxu0 0.0
    %545 = vmatpush1.msra.mxu0 0.0
    %546 = vmatprep.subr.mxu0 0.0
    %547 = vmatpush1.msra.mxu0 0.0
    %548 = vmatprep.subr.mxu0 0.0
    %549 = vmatpush1.msra.mxu0 0.0
    %550 = vmatprep.subr.mxu0 0.0
    %551 = vmatpush1.msra.mxu0 0.0
    %552 = vmatprep.subr.mxu0 0.0
    %553 = vmatpush1.msra.mxu0 0.0
    %554 = vmatprep.subr.mxu0 0.0
    %555 = vmatpush1.msra.mxu0 0.0
    %556 = vmatprep.subr.mxu0 0.0
    %557 = vmatpush1.msra.mxu0 0.0
    %558 = vmatprep.subr.mxu0 0.0
    %559 = vmatpush1.msra.mxu0 0.0
    %560 = vmatprep.subr.mxu0 0.0
    %561 = vmatpush1.msra.mxu0 0.0
    %562 = vmatprep.subr.mxu0 0.0
    %563 = vmatpush1.msra.mxu0 0.0
    %564 = vmatprep.subr.mxu0 0.0
    %565 = vmatpush1.msra.mxu0 0.0
    %566 = vmatprep.subr.mxu0 0.0
    %567 = vmatpush1.msra.mxu0 0.0
    %568 = vmatprep.subr.mxu0 0.0
    %569 = vmatpush1.msra.mxu0 0.0
    %570 = vmatprep.mubr.f32.mxu0 0.0
    %571 = vmatmul.mubr.f32.gmra.mrb[0].mxu0 %v495
    %v572 = vpop.f32.mrb[0].mxu0
    %v573 = vadd.f32 %v185, %v572
    %v574 = vpop.f32.mrb[0].mxu0
    %575 = vmatprep.mubr.f32.mxu0 0.0
    %576 = vmatmul.mubr.f32.gmra.mrb[0].mxu0 %v498
    %v577 = vpop.f32.mrb[0].mxu0
    %v578 = vadd.f32 %v190, %v577
    %v579 = vpop.f32.mrb[0].mxu0
    %580 = vmatprep.mubr.f32.mxu0 0.0
    %581 = vmatmul.mubr.f32.gmra.mrb[0].mxu0 %v501
    %v582 = vpop.f32.mrb[0].mxu0
    %v583 = vadd.f32 %v195, %v582
    %v584 = vpop.f32.mrb[0].mxu0
    %585 = vmatprep.mubr.f32.mxu0 0.0
    %586 = vmatmul.mubr.f32.gmra.mrb[0].mxu0 %v504
    %v587 = vpop.f32.mrb[0].mxu0
    %v588 = vadd.f32 %v200, %v587
    %v589 = vpop.f32.mrb[0].mxu0
    %590 = vdwg.mxu0
    %v592 = vsel %vm105, %v61, 0
    %v595 = vsel %vm105, %v62, 0
    %v598 = vsel %vm105, %v63, 0
    %v601 = vsel %vm105, %v64, 0
    %603 = vmatprep.subr.mxu0 0.0
    %604 = vmatpush1.msra.mxu0 %v35
    %605 = vmatprep.subr.mxu0 0.0
    %606 = vmatpush1.msra.mxu0 %v36
    %607 = vmatprep.subr.mxu0 0.0
    %608 = vmatpush1.msra.mxu0 0.0
    %609 = vmatprep.subr.mxu0 0.0
    %610 = vmatpush1.msra.mxu0 0.0
    %611 = vmatprep.subr.mxu0 0.0
    %612 = vmatpush1.msra.mxu0 0.0
    %613 = vmatprep.subr.mxu0 0.0
    %614 = vmatpush1.msra.mxu0 0.0
    %615 = vmatprep.subr.mxu0 0.0
    %616 = vmatpush1.msra.mxu0 0.0
    %617 = vmatprep.subr.mxu0 0.0
    %618 = vmatpush1.msra.mxu0 0.0
    %619 = vmatprep.subr.mxu0 0.0
    %620 = vmatpush1.msra.mxu0 0.0
    %621 = vmatprep.subr.mxu0 0.0
    %622 = vmatpush1.msra.mxu0 0.0
    %623 = vmatprep.subr.mxu0 0.0
    %624 = vmatpush1.msra.mxu0 0.0
    %625 = vmatprep.subr.mxu0 0.0
    %626 = vmatpush1.msra.mxu0 0.0
    %627 = vmatprep.subr.mxu0 0.0
    %628 = vmatpush1.msra.mxu0 0.0
    %629 = vmatprep.subr.mxu0 0.0
    %630 = vmatpush1.msra.mxu0 0.0
    %631 = vmatprep.subr.mxu0 0.0
    %632 = vmatpush1.msra.mxu0 0.0
    %633 = vmatprep.subr.mxu0 0.0
    %634 = vmatpush1.msra.mxu0 0.0
    %635 = vmatprep.subr.mxu0 0.0
    %636 = vmatpush1.msra.mxu0 0.0
    %637 = vmatprep.subr.mxu0 0.0
    %638 = vmatpush1.msra.mxu0 0.0
    %639 = vmatprep.subr.mxu0 0.0
    %640 = vmatpush1.msra.mxu0 0.0
    %641 = vmatprep.subr.mxu0 0.0
    %642 = vmatpush1.msra.mxu0 0.0
    %643 = vmatprep.subr.mxu0 0.0
    %644 = vmatpush1.msra.mxu0 0.0
    %645 = vmatprep.subr.mxu0 0.0
    %646 = vmatpush1.msra.mxu0 0.0
    %647 = vmatprep.subr.mxu0 0.0
    %648 = vmatpush1.msra.mxu0 0.0
    %649 = vmatprep.subr.mxu0 0.0
    %650 = vmatpush1.msra.mxu0 0.0
    %651 = vmatprep.subr.mxu0 0.0
    %652 = vmatpush1.msra.mxu0 0.0
    %653 = vmatprep.subr.mxu0 0.0
    %654 = vmatpush1.msra.mxu0 0.0
    %655 = vmatprep.subr.mxu0 0.0
    %656 = vmatpush1.msra.mxu0 0.0
    %657 = vmatprep.subr.mxu0 0.0
    %658 = vmatpush1.msra.mxu0 0.0
    %659 = vmatprep.subr.mxu0 0.0
    %660 = vmatpush1.msra.mxu0 0.0
    %661 = vmatprep.subr.mxu0 0.0
    %662 = vmatpush1.msra.mxu0 0.0
    %663 = vmatprep.subr.mxu0 0.0
    %664 = vmatpush1.msra.mxu0 0.0
    %665 = vmatprep.subr.mxu0 0.0
    %666 = vmatpush1.msra.mxu0 0.0
    %667 = vmatprep.mubr.f32.mxu0 0.0
    %668 = vmatmul.mubr.f32.gmra.mrb[0].mxu0 %v592
    %v669 = vpop.f32.mrb[0].mxu0
    %v670 = vadd.f32 %v185, %v669
    %v671 = vpop.f32.mrb[0].mxu0
    %672 = vmatprep.mubr.f32.mxu0 0.0
    %673 = vmatmul.mubr.f32.gmra.mrb[0].mxu0 %v595
    %v674 = vpop.f32.mrb[0].mxu0
    %v675 = vadd.f32 %v190, %v674
    %v676 = vpop.f32.mrb[0].mxu0
    %677 = vmatprep.mubr.f32.mxu0 0.0
    %678 = vmatmul.mubr.f32.gmra.mrb[0].mxu0 %v598
    %v679 = vpop.f32.mrb[0].mxu0
    %v680 = vadd.f32 %v195, %v679
    %v681 = vpop.f32.mrb[0].mxu0
    %682 = vmatprep.mubr.f32.mxu0 0.0
    %683 = vmatmul.mubr.f32.gmra.mrb[0].mxu0 %v601
    %v684 = vpop.f32.mrb[0].mxu0
    %v685 = vadd.f32 %v200, %v684
    %v686 = vpop.f32.mrb[0].mxu0
    %687 = vdwg.mxu0
    %v689 = vsel %vm105, %v65, 0
    %v692 = vsel %vm105, %v66, 0
    %v695 = vsel %vm105, %v67, 0
    %v698 = vsel %vm105, %v68, 0
    %700 = vmatprep.subr.mxu0 0.0
    %701 = vmatpush1.msra.mxu0 %v37
    %702 = vmatprep.subr.mxu0 0.0
    %703 = vmatpush1.msra.mxu0 %v38
    %704 = vmatprep.subr.mxu0 0.0
    %705 = vmatpush1.msra.mxu0 0.0
    %706 = vmatprep.subr.mxu0 0.0
    %707 = vmatpush1.msra.mxu0 0.0
    %708 = vmatprep.subr.mxu0 0.0
    %709 = vmatpush1.msra.mxu0 0.0
    %710 = vmatprep.subr.mxu0 0.0
    %711 = vmatpush1.msra.mxu0 0.0
    %712 = vmatprep.subr.mxu0 0.0
    %713 = vmatpush1.msra.mxu0 0.0
    %714 = vmatprep.subr.mxu0 0.0
    %715 = vmatpush1.msra.mxu0 0.0
    %716 = vmatprep.subr.mxu0 0.0
    %717 = vmatpush1.msra.mxu0 0.0
    %718 = vmatprep.subr.mxu0 0.0
    %719 = vmatpush1.msra.mxu0 0.0
    %720 = vmatprep.subr.mxu0 0.0
    %721 = vmatpush1.msra.mxu0 0.0
    %722 = vmatprep.subr.mxu0 0.0
    %723 = vmatpush1.msra.mxu0 0.0
    %724 = vmatprep.subr.mxu0 0.0
    %725 = vmatpush1.msra.mxu0 0.0
    %726 = vmatprep.subr.mxu0 0.0
    %727 = vmatpush1.msra.mxu0 0.0
    %728 = vmatprep.subr.mxu0 0.0
    %729 = vmatpush1.msra.mxu0 0.0
    %730 = vmatprep.subr.mxu0 0.0
    %731 = vmatpush1.msra.mxu0 0.0
    %732 = vmatprep.subr.mxu0 0.0
    %733 = vmatpush1.msra.mxu0 0.0
    %734 = vmatprep.subr.mxu0 0.0
    %735 = vmatpush1.msra.mxu0 0.0
    %736 = vmatprep.subr.mxu0 0.0
    %737 = vmatpush1.msra.mxu0 0.0
    %738 = vmatprep.subr.mxu0 0.0
    %739 = vmatpush1.msra.mxu0 0.0
    %740 = vmatprep.subr.mxu0 0.0
    %741 = vmatpush1.msra.mxu0 0.0
    %742 = vmatprep.subr.mxu0 0.0
    %743 = vmatpush1.msra.mxu0 0.0
    %744 = vmatprep.subr.mxu0 0.0
    %745 = vmatpush1.msra.mxu0 0.0
    %746 = vmatprep.subr.mxu0 0.0
    %747 = vmatpush1.msra.mxu0 0.0
    %748 = vmatprep.subr.mxu0 0.0
    %749 = vmatpush1.msra.mxu0 0.0
    %750 = vmatprep.subr.mxu0 0.0
    %751 = vmatpush1.msra.mxu0 0.0
    %752 = vmatprep.subr.mxu0 0.0
    %753 = vmatpush1.msra.mxu0 0.0
    %754 = vmatprep.subr.mxu0 0.0
    %755 = vmatpush1.msra.mxu0 0.0
    %756 = vmatprep.subr.mxu0 0.0
    %757 = vmatpush1.msra.mxu0 0.0
    %758 = vmatprep.subr.mxu0 0.0
    %759 = vmatpush1.msra.mxu0 0.0
    %760 = vmatprep.subr.mxu0 0.0
    %761 = vmatpush1.msra.mxu0 0.0
    %762 = vmatprep.subr.mxu0 0.0
    %763 = vmatpush1.msra.mxu0 0.0
    %764 = vmatprep.mubr.f32.mxu0 0.0
    %765 = vmatmul.mubr.f32.gmra.mrb[0].mxu0 %v689
    %v766 = vpop.f32.mrb[0].mxu0
    %v767 = vadd.f32 %v185, %v766
    %v768 = vpop.f32.mrb[0].mxu0
    %769 = vmatprep.mubr.f32.mxu0 0.0
    %770 = vmatmul.mubr.f32.gmra.mrb[0].mxu0 %v692
    %v771 = vpop.f32.mrb[0].mxu0
    %v772 = vadd.f32 %v190, %v771
    %v773 = vpop.f32.mrb[0].mxu0
    %774 = vmatprep.mubr.f32.mxu0 0.0
    %775 = vmatmul.mubr.f32.gmra.mrb[0].mxu0 %v695
    %v776 = vpop.f32.mrb[0].mxu0
    %v777 = vadd.f32 %v195, %v776
    %v778 = vpop.f32.mrb[0].mxu0
    %779 = vmatprep.mubr.f32.mxu0 0.0
    %780 = vmatmul.mubr.f32.gmra.mrb[0].mxu0 %v698
    %v781 = vpop.f32.mrb[0].mxu0
    %v782 = vadd.f32 %v200, %v781
    %v783 = vpop.f32.mrb[0].mxu0
    %784 = vdwg.mxu0
    %v786 = vsel %vm105, %v69, 0
    %v789 = vsel %vm105, %v70, 0
    %v792 = vsel %vm105, %v71, 0
    %v795 = vsel %vm105, %v72, 0
    %797 = vmatprep.subr.mxu0 0.0
    %798 = vmatpush1.msra.mxu0 %v39
    %799 = vmatprep.subr.mxu0 0.0
    %800 = vmatpush1.msra.mxu0 %v40
    %801 = vmatprep.subr.mxu0 0.0
    %802 = vmatpush1.msra.mxu0 0.0
    %803 = vmatprep.subr.mxu0 0.0
    %804 = vmatpush1.msra.mxu0 0.0
    %805 = vmatprep.subr.mxu0 0.0
    %806 = vmatpush1.msra.mxu0 0.0
    %807 = vmatprep.subr.mxu0 0.0
    %808 = vmatpush1.msra.mxu0 0.0
    %809 = vmatprep.subr.mxu0 0.0
    %810 = vmatpush1.msra.mxu0 0.0
    %811 = vmatprep.subr.mxu0 0.0
    %812 = vmatpush1.msra.mxu0 0.0
    %813 = vmatprep.subr.mxu0 0.0
    %814 = vmatpush1.msra.mxu0 0.0
    %815 = vmatprep.subr.mxu0 0.0
    %816 = vmatpush1.msra.mxu0 0.0
    %817 = vmatprep.subr.mxu0 0.0
    %818 = vmatpush1.msra.mxu0 0.0
    %819 = vmatprep.subr.mxu0 0.0
    %820 = vmatpush1.msra.mxu0 0.0
    %821 = vmatprep.subr.mxu0 0.0
    %822 = vmatpush1.msra.mxu0 0.0
    %823 = vmatprep.subr.mxu0 0.0
    %824 = vmatpush1.msra.mxu0 0.0
    %825 = vmatprep.subr.mxu0 0.0
    %826 = vmatpush1.msra.mxu0 0.0
    %827 = vmatprep.subr.mxu0 0.0
    %828 = vmatpush1.msra.mxu0 0.0
    %829 = vmatprep.subr.mxu0 0.0
    %830 = vmatpush1.msra.mxu0 0.0
    %831 = vmatprep.subr.mxu0 0.0
    %832 = vmatpush1.msra.mxu0 0.0
    %833 = vmatprep.subr.mxu0 0.0
    %834 = vmatpush1.msra.mxu0 0.0
    %835 = vmatprep.subr.mxu0 0.0
    %836 = vmatpush1.msra.mxu0 0.0
    %837 = vmatprep.subr.mxu0 0.0
    %838 = vmatpush1.msra.mxu0 0.0
    %839 = vmatprep.subr.mxu0 0.0
    %840 = vmatpush1.msra.mxu0 0.0
    %841 = vmatprep.subr.mxu0 0.0
    %842 = vmatpush1.msra.mxu0 0.0
    %843 = vmatprep.subr.mxu0 0.0
    %844 = vmatpush1.msra.mxu0 0.0
    %845 = vmatprep.subr.mxu0 0.0
    %846 = vmatpush1.msra.mxu0 0.0
    %847 = vmatprep.subr.mxu0 0.0
    %848 = vmatpush1.msra.mxu0 0.0
    %849 = vmatprep.subr.mxu0 0.0
    %850 = vmatpush1.msra.mxu0 0.0
    %851 = vmatprep.subr.mxu0 0.0
    %852 = vmatpush1.msra.mxu0 0.0
    %853 = vmatprep.subr.mxu0 0.0
    %854 = vmatpush1.msra.mxu0 0.0
    %855 = vmatprep.subr.mxu0 0.0
    %856 = vmatpush1.msra.mxu0 0.0
    %857 = vmatprep.subr.mxu0 0.0
    %858 = vmatpush1.msra.mxu0 0.0
    %859 = vmatprep.subr.mxu0 0.0
    %860 = vmatpush1.msra.mxu0 0.0
    %861 = vmatprep.mubr.f32.mxu0 0.0
    %862 = vmatmul.mubr.f32.gmra.mrb[0].mxu0 %v786
    %v863 = vpop.f32.mrb[0].mxu0
    %v864 = vadd.f32 %v185, %v863
    %v865 = vpop.f32.mrb[0].mxu0
    %866 = vmatprep.mubr.f32.mxu0 0.0
    %867 = vmatmul.mubr.f32.gmra.mrb[0].mxu0 %v789
    %v868 = vpop.f32.mrb[0].mxu0
    %v869 = vadd.f32 %v190, %v868
    %v870 = vpop.f32.mrb[0].mxu0
    %871 = vmatprep.mubr.f32.mxu0 0.0
    %872 = vmatmul.mubr.f32.gmra.mrb[0].mxu0 %v792
    %v873 = vpop.f32.mrb[0].mxu0
    %v874 = vadd.f32 %v195, %v873
    %v875 = vpop.f32.mrb[0].mxu0
    %876 = vmatprep.mubr.f32.mxu0 0.0
    %877 = vmatmul.mubr.f32.gmra.mrb[0].mxu0 %v795
    %v878 = vpop.f32.mrb[0].mxu0
    %v879 = vadd.f32 %v200, %v878
    %v880 = vpop.f32.mrb[0].mxu0
    %881 = vdwg.mxu0
    %v883 = vsel %vm105, %v73, 0
    %v886 = vsel %vm105, %v74, 0
    %v889 = vsel %vm105, %v75, 0
    %v892 = vsel %vm105, %v76, 0
    %894 = vmatprep.subr.mxu0 0.0
    %895 = vmatpush1.msra.mxu0 %v41
    %896 = vmatprep.subr.mxu0 0.0
    %897 = vmatpush1.msra.mxu0 %v42
    %898 = vmatprep.subr.mxu0 0.0
    %899 = vmatpush1.msra.mxu0 0.0
    %900 = vmatprep.subr.mxu0 0.0
    %901 = vmatpush1.msra.mxu0 0.0
    %902 = vmatprep.subr.mxu0 0.0
    %903 = vmatpush1.msra.mxu0 0.0
    %904 = vmatprep.subr.mxu0 0.0
    %905 = vmatpush1.msra.mxu0 0.0
    %906 = vmatprep.subr.mxu0 0.0
    %907 = vmatpush1.msra.mxu0 0.0
    %908 = vmatprep.subr.mxu0 0.0
    %909 = vmatpush1.msra.mxu0 0.0
    %910 = vmatprep.subr.mxu0 0.0
    %911 = vmatpush1.msra.mxu0 0.0
    %912 = vmatprep.subr.mxu0 0.0
    %913 = vmatpush1.msra.mxu0 0.0
    %914 = vmatprep.subr.mxu0 0.0
    %915 = vmatpush1.msra.mxu0 0.0
    %916 = vmatprep.subr.mxu0 0.0
    %917 = vmatpush1.msra.mxu0 0.0
    %918 = vmatprep.subr.mxu0 0.0
    %919 = vmatpush1.msra.mxu0 0.0
    %920 = vmatprep.subr.mxu0 0.0
    %921 = vmatpush1.msra.mxu0 0.0
    %922 = vmatprep.subr.mxu0 0.0
    %923 = vmatpush1.msra.mxu0 0.0
    %924 = vmatprep.subr.mxu0 0.0
    %925 = vmatpush1.msra.mxu0 0.0
    %926 = vmatprep.subr.mxu0 0.0
    %927 = vmatpush1.msra.mxu0 0.0
    %928 = vmatprep.subr.mxu0 0.0
    %929 = vmatpush1.msra.mxu0 0.0
    %930 = vmatprep.subr.mxu0 0.0
    %931 = vmatpush1.msra.mxu0 0.0
    %932 = vmatprep.subr.mxu0 0.0
    %933 = vmatpush1.msra.mxu0 0.0
    %934 = vmatprep.subr.mxu0 0.0
    %935 = vmatpush1.msra.mxu0 0.0
    %936 = vmatprep.subr.mxu0 0.0
    %937 = vmatpush1.msra.mxu0 0.0
    %938 = vmatprep.subr.mxu0 0.0
    %939 = vmatpush1.msra.mxu0 0.0
    %940 = vmatprep.subr.mxu0 0.0
    %941 = vmatpush1.msra.mxu0 0.0
    %942 = vmatprep.subr.mxu0 0.0
    %943 = vmatpush1.msra.mxu0 0.0
    %944 = vmatprep.subr.mxu0 0.0
    %945 = vmatpush1.msra.mxu0 0.0
    %946 = vmatprep.subr.mxu0 0.0
    %947 = vmatpush1.msra.mxu0 0.0
    %948 = vmatprep.subr.mxu0 0.0
    %949 = vmatpush1.msra.mxu0 0.0
    %950 = vmatprep.subr.mxu0 0.0
    %951 = vmatpush1.msra.mxu0 0.0
    %952 = vmatprep.subr.mxu0 0.0
    %953 = vmatpush1.msra.mxu0 0.0
    %954 = vmatprep.subr.mxu0 0.0
    %955 = vmatpush1.msra.mxu0 0.0
    %956 = vmatprep.subr.mxu0 0.0
    %957 = vmatpush1.msra.mxu0 0.0
    %958 = vmatprep.mubr.f32.mxu0 0.0
    %959 = vmatmul.mubr.f32.gmra.mrb[0].mxu0 %v883
    %v960 = vpop.f32.mrb[0].mxu0
    %v961 = vadd.f32 %v185, %v960
    %v962 = vpop.f32.mrb[0].mxu0
    %963 = vmatprep.mubr.f32.mxu0 0.0
    %964 = vmatmul.mubr.f32.gmra.mrb[0].mxu0 %v886
    %v965 = vpop.f32.mrb[0].mxu0
    %v966 = vadd.f32 %v190, %v965
    %v967 = vpop.f32.mrb[0].mxu0
    %968 = vmatprep.mubr.f32.mxu0 0.0
    %969 = vmatmul.mubr.f32.gmra.mrb[0].mxu0 %v889
    %v970 = vpop.f32.mrb[0].mxu0
    %v971 = vadd.f32 %v195, %v970
    %v972 = vpop.f32.mrb[0].mxu0
    %973 = vmatprep.mubr.f32.mxu0 0.0
    %974 = vmatmul.mubr.f32.gmra.mrb[0].mxu0 %v892
    %v975 = vpop.f32.mrb[0].mxu0
    %v976 = vadd.f32 %v200, %v975
    %v977 = vpop.f32.mrb[0].mxu0
    %978 = vdwg.mxu0
    %v979 = vtanh.pop %v282
    %v980 = vtanh.pop %v287
    %v981 = vtanh.pop %v292
    %v982 = vtanh.pop %v297
    %v983 = vtanh.pop %v379
    %v984 = vtanh.pop %v384
    %v985 = vtanh.pop %v389
    %v986 = vtanh.pop %v394
    %v987 = vtanh.pop %v476
    %v988 = vtanh.pop %v481
    %v989 = vtanh.pop %v486
    %v990 = vtanh.pop %v491
    %v991 = vtanh.pop %v573
    %v992 = vtanh.pop %v578
    %v993 = vtanh.pop %v583
    %v994 = vtanh.pop %v588
    %v995 = vtanh.pop %v670
    %v996 = vtanh.pop %v675
    %v997 = vtanh.pop %v680
    %v998 = vtanh.pop %v685
    %v999 = vtanh.pop %v767
    %v1000 = vtanh.pop %v772
    %v1001 = vtanh.pop %v777
    %v1002 = vtanh.pop %v782
    %v1003 = vtanh.pop %v864
    %v1004 = vtanh.pop %v869
    %v1005 = vtanh.pop %v874
    %v1006 = vtanh.pop %v879
    %v1007 = vtanh.pop %v961
    %v1008 = vtanh.pop %v966
    %v1009 = vtanh.pop %v971
    %v1010 = vtanh.pop %v976
    %v1011 = vld [vmem:[%s5] sm:$0xff]
    %v1012 = vld [vmem:[%s5 + $0x8] sm:$0xff]
    %v1013 = vld [vmem:[%s5 + $0x10] sm:$0xff]
    %v1014 = vld [vmem:[%s5 + $0x18] sm:$0xff]
    %1016 = vset.pattern.permute.xlu0 0
    %1017 = vperm.xlu0 %1016, %v1011
    %v1018 = vpop.permute.xlu0 %1017
    %1021 = vset.pattern.permute.xlu0 0
    %1022 = vperm.xlu0 %1021, %v1012
    %v1023 = vpop.permute.xlu0 %1022
    %1026 = vset.pattern.permute.xlu0 0
    %1027 = vperm.xlu0 %1026, %v1013
    %v1028 = vpop.permute.xlu0 %1027
    %1031 = vset.pattern.permute.xlu0 0
    %1032 = vperm.xlu0 %1031, %v1014
    %v1033 = vpop.permute.xlu0 %1032
    %v1035 = vmul.f32 %v979, %v1018
    %v1036 = vmul.f32 %v980, %v1023
    %v1037 = vmul.f32 %v981, %v1028
    %v1038 = vmul.f32 %v982, %v1033
    %v1039 = vmul.f32 %v983, %v1018
    %v1040 = vmul.f32 %v984, %v1023
    %v1041 = vmul.f32 %v985, %v1028
    %v1042 = vmul.f32 %v986, %v1033
    %v1043 = vmul.f32 %v987, %v1018
    %v1044 = vmul.f32 %v988, %v1023
    %v1045 = vmul.f32 %v989, %v1028
    %v1046 = vmul.f32 %v990, %v1033
    %v1047 = vmul.f32 %v991, %v1018
    %v1048 = vmul.f32 %v992, %v1023
    %v1049 = vmul.f32 %v993, %v1028
    %v1050 = vmul.f32 %v994, %v1033
    %v1051 = vmul.f32 %v995, %v1018
    %v1052 = vmul.f32 %v996, %v1023
    %v1053 = vmul.f32 %v997, %v1028
    %v1054 = vmul.f32 %v998, %v1033
    %v1055 = vmul.f32 %v999, %v1018
    %v1056 = vmul.f32 %v1000, %v1023
    %v1057 = vmul.f32 %v1001, %v1028
    %v1058 = vmul.f32 %v1002, %v1033
    %v1059 = vmul.f32 %v1003, %v1018
    %v1060 = vmul.f32 %v1004, %v1023
    %v1061 = vmul.f32 %v1005, %v1028
    %v1062 = vmul.f32 %v1006, %v1033
    %v1063 = vmul.f32 %v1007, %v1018
    %v1064 = vmul.f32 %v1008, %v1023
    %v1065 = vmul.f32 %v1009, %v1028
    %v1066 = vmul.f32 %v1010, %v1033
    %v1067 = vadd.f32 %v1035, %v1036
    %v1068 = vadd.f32 %v1067, %v1037
    %v1069 = vadd.f32 %v1068, %v1038
    %v1070 = vrot.slane %v1069, 4
    %v1071 = vadd.f32 %v1069, %v1070
    %v1072 = vrot.slane %v1071, 2
    %v1073 = vadd.f32 %v1071, %v1072
    %v1074 = vrot.slane %v1073, 1
    %v1075 = vadd.f32 %v1073, %v1074
    %v1076 = vadd.f32 %v1039, %v1040
    %v1077 = vadd.f32 %v1076, %v1041
    %v1078 = vadd.f32 %v1077, %v1042
    %v1079 = vrot.slane %v1078, 4
    %v1080 = vadd.f32 %v1078, %v1079
    %v1081 = vrot.slane %v1080, 2
    %v1082 = vadd.f32 %v1080, %v1081
    %v1083 = vrot.slane %v1082, 1
    %v1084 = vadd.f32 %v1082, %v1083
    %v1085 = vadd.f32 %v1043, %v1044
    %v1086 = vadd.f32 %v1085, %v1045
    %v1087 = vadd.f32 %v1086, %v1046
    %v1088 = vrot.slane %v1087, 4
    %v1089 = vadd.f32 %v1087, %v1088
    %v1090 = vrot.slane %v1089, 2
    %v1091 = vadd.f32 %v1089, %v1090
    %v1092 = vrot.slane %v1091, 1
    %v1093 = vadd.f32 %v1091, %v1092
    %v1094 = vadd.f32 %v1047, %v1048
    %v1095 = vadd.f32 %v1094, %v1049
    %v1096 = vadd.f32 %v1095, %v1050
    %v1097 = vrot.slane %v1096, 4
    %v1098 = vadd.f32 %v1096, %v1097
    %v1099 = vrot.slane %v1098, 2
    %v1100 = vadd.f32 %v1098, %v1099
    %v1101 = vrot.slane %v1100, 1
    %v1102 = vadd.f32 %v1100, %v1101
    %v1103 = vadd.f32 %v1051, %v1052
    %v1104 = vadd.f32 %v1103, %v1053
    %v1105 = vadd.f32 %v1104, %v1054
    %v1106 = vrot.slane %v1105, 4
    %v1107 = vadd.f32 %v1105, %v1106
    %v1108 = vrot.slane %v1107, 2
    %v1109 = vadd.f32 %v1107, %v1108
    %v1110 = vrot.slane %v1109, 1
    %v1111 = vadd.f32 %v1109, %v1110
    %v1112 = vadd.f32 %v1055, %v1056
    %v1113 = vadd.f32 %v1112, %v1057
    %v1114 = vadd.f32 %v1113, %v1058
    %v1115 = vrot.slane %v1114, 4
    %v1116 = vadd.f32 %v1114, %v1115
    %v1117 = vrot.slane %v1116, 2
    %v1118 = vadd.f32 %v1116, %v1117
    %v1119 = vrot.slane %v1118, 1
    %v1120 = vadd.f32 %v1118, %v1119
    %v1121 = vadd.f32 %v1059, %v1060
    %v1122 = vadd.f32 %v1121, %v1061
    %v1123 = vadd.f32 %v1122, %v1062
    %v1124 = vrot.slane %v1123, 4
    %v1125 = vadd.f32 %v1123, %v1124
    %v1126 = vrot.slane %v1125, 2
    %v1127 = vadd.f32 %v1125, %v1126
    %v1128 = vrot.slane %v1127, 1
    %v1129 = vadd.f32 %v1127, %v1128
    %v1130 = vadd.f32 %v1063, %v1064
    %v1131 = vadd.f32 %v1130, %v1065
    %v1132 = vadd.f32 %v1131, %v1066
    %v1133 = vrot.slane %v1132, 4
    %v1134 = vadd.f32 %v1132, %v1133
    %v1135 = vrot.slane %v1134, 2
    %v1136 = vadd.f32 %v1134, %v1135
    %v1137 = vrot.slane %v1136, 1
    %v1138 = vadd.f32 %v1136, %v1137
    %v1139 = vmax.f32 %v1075, %v1111
    %v1140 = vmax.f32 %v1084, %v1120
    %v1141 = vmax.f32 %v1093, %v1129
    %v1142 = vmax.f32 %v1102, %v1138
    %v1143 = vmax.f32 %v1139, %v1140
    %v1144 = vmax.f32 %v1141, %v1142
    %v1145 = vmax.f32 %v1143, %v1144
    %v1146 = vsub.f32 %v1075, %v1145
    %v1147 = vsub.f32 %v1084, %v1145
    %v1148 = vsub.f32 %v1093, %v1145
    %v1149 = vsub.f32 %v1102, %v1145
    %v1150 = vsub.f32 %v1111, %v1145
    %v1151 = vsub.f32 %v1120, %v1145
    %v1152 = vsub.f32 %v1129, %v1145
    %v1153 = vsub.f32 %v1138, %v1145
    %v1154 = vmul.f32 %v1146, 1.442695
    %v1155 = vpow.pop %v1154
    %v1156 = vmul.f32 %v1147, 1.442695
    %v1157 = vpow.pop %v1156
    %v1158 = vmul.f32 %v1148, 1.442695
    %v1159 = vpow.pop %v1158
    %v1160 = vmul.f32 %v1149, 1.442695
    %v1161 = vpow.pop %v1160
    %v1162 = vmul.f32 %v1150, 1.442695
    %v1163 = vpow.pop %v1162
    %v1164 = vmul.f32 %v1151, 1.442695
    %v1165 = vpow.pop %v1164
    %v1166 = vmul.f32 %v1152, 1.442695
    %v1167 = vpow.pop %v1166
    %v1168 = vmul.f32 %v1153, 1.442695
    %v1169 = vpow.pop %v1168
    %v1170 = vadd.f32 %v1155, %v1157
    %v1171 = vadd.f32 %v1170, %v1159
    %v1172 = vadd.f32 %v1171, %v1161
    %v1173 = vadd.f32 %v1172, %v1163
    %v1174 = vadd.f32 %v1173, %v1165
    %v1175 = vadd.f32 %v1174, %v1167
    %v1176 = vadd.f32 %v1175, %v1169
    %v1177 = vrcp.pop %v1176
    %v1178 = vmul.f32 %v1155, %v1177
    %v1179 = vmul.f32 %v1157, %v1177
    %v1180 = vmul.f32 %v1159, %v1177
    %v1181 = vmul.f32 %v1161, %v1177
    %v1182 = vmul.f32 %v1163, %v1177
    %v1183 = vmul.f32 %v1165, %v1177
    %v1184 = vmul.f32 %v1167, %v1177
    %v1185 = vmul.f32 %v1169, %v1177
    %v1186 = vmul.f32 %v1178, %v27
    %v1187 = vmul.f32 %v1178, %v28
    %v1188 = vmul.f32 %v1179, %v29
    %v1189 = vmul.f32 %v1179, %v30
    %v1190 = vmul.f32 %v1180, %v31
    %v1191 = vmul.f32 %v1180, %v32
    %v1192 = vmul.f32 %v1181, %v33
    %v1193 = vmul.f32 %v1181, %v34
    %v1194 = vmul.f32 %v1182, %v35
    %v1195 = vmul.f32 %v1182, %v36
    %v1196 = vmul.f32 %v1183, %v37
    %v1197 = vmul.f32 %v1183, %v38
    %v1198 = vmul.f32 %v1184, %v39
    %v1199 = vmul.f32 %v1184, %v40
    %v1200 = vmul.f32 %v1185, %v41
    %v1201 = vmul.f32 %v1185, %v42
    %v1202 = vadd.f32 %v1186, %v1188
    %v1203 = vadd.f32 %v1202, %v1190
    %v1204 = vadd.f32 %v1203, %v1192
    %v1205 = vadd.f32 %v1204, %v1194
    %v1206 = vadd.f32 %v1205, %v1196
    %v1207 = vadd.f32 %v1206, %v1198
    %v1208 = vadd.f32 %v1207, %v1200
    %v1209 = vadd.f32 %v1187, %v1189
    %v1210 = vadd.f32 %v1209, %v1191
    %v1211 = vadd.f32 %v1210, %v1193
    %v1212 = vadd.f32 %v1211, %v1195
    %v1213 = vadd.f32 %v1212, %v1197
    %v1214 = vadd.f32 %v1213, %v1199
    %v1215 = vadd.f32 %v1214, %v1201
    %1216 = vst [vmem:[#allocation2] sm:$0xff] %v1208
    %1217 = vst [vmem:[#allocation2 + $0x8] sm:$0xff] %v1215
    %vm1226 = vcmask 1041409
    %v1227 = vsel %vm1226, %v1179, %v1178
    %vm1228 = vcmask 1042434
    %v1229 = vsel %vm1228, %v1180, %v1227
    %vm1230 = vcmask 1043459
    %v1231 = vsel %vm1230, %v1181, %v1229
    %vm1232 = vcmask 1044484
    %v1233 = vsel %vm1232, %v1182, %v1231
    %vm1234 = vcmask 1045509
    %v1235 = vsel %vm1234, %v1183, %v1233
    %vm1236 = vcmask 1046534
    %v1237 = vsel %vm1236, %v1184, %v1235
    %vm1238 = vcmask 1047559
    %v1239 = vsel %vm1238, %v1185, %v1237
    %1241 = vst [vmem:[#allocation4] sm:$0xff] %v1239
    // Predicated region
    $region26: #{tpu_custom_call.1} parent=1 // pred_check
      _
    $region27: #{tpu_custom_call.1} parent=1 // pred_check_branch
      %1243 = sbr.rel (0) target = $region29
    $region28: #{tpu_custom_call.1} parent=1 // pred_region
      %s1245 = ssub.s32 256, 256
      %1246 = vsyncadd [#allocation3], %s1245
      %s1247 = sshll.u32 [#allocation2], 4
      %s1248 = int_to_ptr.vmem [resolvable:$true] %s1247
      %1253 = dma.vmem_to_hbm [thread:$0]  %s1248, 256, %s6, [#allocation3], 128, 128, 8
    $region29: #{tpu_custom_call.1} parent=1 // pred_fallthru
      _
    // Predicated region
    $region30: #{tpu_custom_call.1} parent=1 // pred_check
      _
    $region31: #{tpu_custom_call.1} parent=1 // pred_check_branch
      %1255 = sbr.rel (0) target = $region33
    $region32: #{tpu_custom_call.1} parent=1 // pred_region
      %s1257 = ssub.s32 128, 128
      %1258 = vsyncadd [#allocation5], %s1257
      %s1260 = sshll.u32 [#allocation4], 4
      %s1261 = int_to_ptr.vmem [resolvable:$true] %s1260
      %1263 = dma.vmem_to_hbm [thread:$0]  %s1261, 128, %s7, [#allocation5]
    $region33: #{tpu_custom_call.1} parent=1 // pred_fallthru
      _
    // Predicated region
    $region34: #{tpu_custom_call.1} parent=1 // pred_check
      _
    $region35: #{tpu_custom_call.1} parent=1 // pred_check_branch
      %1265 = sbr.rel (0) target = $region37
    $region36: #{tpu_custom_call.1} parent=1 // pred_region
      %1266 = dma.done [#allocation3], 256
    $region37: #{tpu_custom_call.1} parent=1 // pred_fallthru
      _
    // Predicated region
    $region38: #{tpu_custom_call.1} parent=1 // pred_check
      _
    $region39: #{tpu_custom_call.1} parent=1 // pred_check_branch
      %1268 = sbr.rel (0) target = $region41
    $region40: #{tpu_custom_call.1} parent=1 // pred_region
      %1269 = dma.done [#allocation5], 128
    $region41: #{tpu_custom_call.1} parent=1 // pred_fallthru
      _
    %1270 = vsyncpa [#allocation3], 1
    %1271 = vsyncpa [#allocation5], 1

</llo_original>
